<compile_context>
chip_gen: v7x
topology: tpu7x:2x2x1
jax: 0.10.0
libtpu: 0.0.40
codegen_flags: <defaults>
</compile_context>

<pallas_src>
import functools

import jax
import jax.numpy as jnp
from jax.experimental import pallas as pl
from jax.experimental.pallas import tpu as pltpu


def _ceil_div(a, b):
    return -(-a // b)


def _round_up(n, m):
    return _ceil_div(n, m) * m


def quadra_net_kernel(x_ref, w1_ref, w2_ref, w3_ref, w4_ref, o_ref):
    """One batch tile.

    x_ref: (TB, 2) batch-major input block.
    w*_ref: full PyTorch-layout (out, in) weights, VMEM-resident (constant index_map).
    o_ref: (TB, 4) batch-major output block (softmax probabilities).
    """
    # Batch -> lane transpose on the (idle) XLU so all MXU/VPU work is lane-dense.
    x = x_ref[...].T                                     # (2, TB)

    w1 = w1_ref[...]                                     # (10, 2)
    w2 = w2_ref[...]                                     # (50, 10)
    w3 = w3_ref[...]                                     # (4, 50)
    w4 = w4_ref[...]                                     # (4, 4)

    # Lane-dense MLP: batch is the lane (N) dimension of every MXU call.
    h = jnp.maximum(jnp.dot(w1, x, preferred_element_type=jnp.float32), 0.0)   # (10, TB)
    h = jnp.maximum(jnp.dot(w2, h, preferred_element_type=jnp.float32), 0.0)   # (50, TB)
    h = jnp.maximum(jnp.dot(w3, h, preferred_element_type=jnp.float32), 0.0)   # (4, TB)
    z = jnp.dot(w4, h, preferred_element_type=jnp.float32)                     # (4, TB)

    # Softmax over the 4 class rows (sublane axis), unrolled pairwise -> pure VPU.
    z0, z1, z2, z3 = z[0:1, :], z[1:2, :], z[2:3, :], z[3:4, :]
    m = jnp.maximum(jnp.maximum(z0, z1), jnp.maximum(z2, z3))                  # (1, TB)
    e = jnp.exp(z - m)                                                         # (4, TB)
    denom = (e[0:1, :] + e[1:2, :]) + (e[2:3, :] + e[3:4, :])                  # (1, TB)
    probs = e / denom                                    # exact f32 normalization

    # Lane -> batch transpose back (XLU) and store the (TB, 4) output block.
    # Rows of the final ragged tile beyond B are masked out by Pallas.
    o_ref[...] = probs.T.astype(o_ref.dtype)


@functools.partial(jax.jit, static_argnames=("tb", "out_dtype"))
def quadra_gpu_net(x, w1, w2, w3, w4, *, tb=4096, out_dtype=jnp.float32):
    """x: (B, 2) f32; w1..w4: PyTorch-layout (out, in) f32.  Returns (B, 4) softmax."""
    if tb % 128 != 0:
        raise ValueError(f"tb must be a multiple of 128, got {tb}")
    B = x.shape[0]

    # Effective batch tile: as large as requested (amortizes per-step grid
    # overhead), but capped so the grid keeps >= 2 tiles whenever the batch
    # allows it -- v7x shards the "parallel" axis across its 2 TensorCores.
    if B < 8:
        tb_eff = B                                   # block == full array
    else:
        tb_eff = min(tb, _round_up(_ceil_div(B, 2), 8))
    grid = _ceil_div(B, tb_eff)

    out = pl.pallas_call(
        quadra_net_kernel,
        out_shape=jax.ShapeDtypeStruct((B, 4), out_dtype),
        grid_spec=pltpu.PrefetchScalarGridSpec(
            num_scalar_prefetch=0,
            grid=(grid,),
            in_specs=[
                pl.BlockSpec((tb_eff, 2), lambda i: (i, 0)),   # x: batch-tiled
                pl.BlockSpec((10, 2), lambda i: (0, 0)),       # w1: VMEM-resident
                pl.BlockSpec((50, 10), lambda i: (0, 0)),      # w2: VMEM-resident
                pl.BlockSpec((4, 50), lambda i: (0, 0)),       # w3: VMEM-resident
                pl.BlockSpec((4, 4), lambda i: (0, 0)),        # w4: VMEM-resident
            ],
            out_specs=pl.BlockSpec((tb_eff, 4), lambda i: (i, 0)),
        ),
        compiler_params=pltpu.CompilerParams(
            dimension_semantics=("parallel",),   # batch tiles across TCs (v7x)
        ),
    )(x, w1, w2, w3, w4)
    return out


def init_params(key):
    """nn.Linear default init, PyTorch layout (out_features, in_features)."""
    dims = [(10, 2), (50, 10), (4, 50), (4, 4)]
    keys = jax.random.split(key, len(dims))
    weights = []
    for k, (fan_out, fan_in) in zip(keys, dims):
        bound = float(fan_in) ** -0.5
        weights.append(
            jax.random.uniform(k, (fan_out, fan_in), dtype=jnp.float32,
                               minval=-bound, maxval=bound))
    return weights


def reference(x, w1, w2, w3, w4):
    h = jnp.maximum(x @ w1.T, 0.0)
    h = jnp.maximum(h @ w2.T, 0.0)
    h = jnp.maximum(h @ w3.T, 0.0)
    z = h @ w4.T
    return jax.nn.softmax(z, axis=1)


if __name__ == "__main__":
    key = jax.random.PRNGKey(0)
    k_x, k_w, k_x2 = jax.random.split(key, 3)

    w1, w2, w3, w4 = init_params(k_w)

    # no_grad_param from the PyTorch module (unused in forward), kept for parity.
    no_grad_param = jnp.array([2, 2], dtype=jnp.int32)

    # Small shape consistent with the module (features fixed: 2 -> ... -> 4).
    batch = 8
    x = jax.random.normal(k_x, (batch, 2), dtype=jnp.float32)
    out = jax.block_until_ready(quadra_gpu_net(x, w1, w2, w3, w4))

    ref = reference(x, w1, w2, w3, w4)
    assert out.shape == (batch, 4)
    assert out.dtype == jnp.float32
    assert jnp.allclose(out, ref, atol=1e-3, rtol=1e-3)
    # Exact (non-approx) normalization -> rows sum to 1 at f32 precision.
    assert jnp.allclose(jnp.sum(out, axis=1), jnp.ones((batch,)), atol=1e-5)

    # Multi-tile path: >= 2 "parallel" batch tiles with a ragged (masked) tail.
    batch2 = 600
    x2 = jax.random.normal(k_x2, (batch2, 2), dtype=jnp.float32)
    out2 = jax.block_until_ready(quadra_gpu_net(x2, w1, w2, w3, w4))
    assert out2.shape == (batch2, 4)
    assert jnp.allclose(out2, reference(x2, w1, w2, w3, w4), atol=1e-3, rtol=1e-3)

    print("KERNEL_OK")
</pallas_src>

<mosaic_0001>
module attributes {stable_mosaic.version = 11 : i64} {
  func.func @quadra_net_kernel(%arg0: i32, %arg1: memref<8x2xf32, #tpu.memory_space<vmem>>, %arg2: memref<10x2xf32, #tpu.memory_space<vmem>>, %arg3: memref<50x10xf32, #tpu.memory_space<vmem>>, %arg4: memref<4x50xf32, #tpu.memory_space<vmem>>, %arg5: memref<4x4xf32, #tpu.memory_space<vmem>>, %arg6: memref<8x4xf32, #tpu.memory_space<vmem>>) attributes {dimension_semantics = [#tpu.dimension_semantics<parallel>], iteration_bounds = array<i64: 1>, scalar_prefetch = 0 : i64, scratch_operands = 0 : i64, tpu.core_type = #tpu.core_type<tc>, window_params = [{transform_indices = @transform_0, window_bounds = array<i64: 8, 2>}, {pipeline_mode = #tpu.pipeline_mode<synchronous>, transform_indices = @transform_1, window_bounds = array<i64: 10, 2>}, {pipeline_mode = #tpu.pipeline_mode<synchronous>, transform_indices = @transform_2, window_bounds = array<i64: 50, 10>}, {pipeline_mode = #tpu.pipeline_mode<synchronous>, transform_indices = @transform_3, window_bounds = array<i64: 4, 50>}, {pipeline_mode = #tpu.pipeline_mode<synchronous>, transform_indices = @transform_4, window_bounds = array<i64: 4, 4>}, {transform_indices = @transform_5, window_bounds = array<i64: 8, 4>}]} {
    %c0 = arith.constant 0 : index
    %c0_0 = arith.constant 0 : index
    %0 = vector.load %arg1[%c0, %c0_0] : memref<8x2xf32, #tpu.memory_space<vmem>>, vector<8x2xf32>
    %1 = tpu.transpose %0, [1, 0] : vector<8x2xf32> -> vector<2x8xf32>
    %c0_1 = arith.constant 0 : index
    %c0_2 = arith.constant 0 : index
    %2 = vector.load %arg2[%c0_1, %c0_2] : memref<10x2xf32, #tpu.memory_space<vmem>>, vector<10x2xf32>
    %c0_3 = arith.constant 0 : index
    %c0_4 = arith.constant 0 : index
    %3 = vector.load %arg3[%c0_3, %c0_4] : memref<50x10xf32, #tpu.memory_space<vmem>>, vector<50x10xf32>
    %c0_5 = arith.constant 0 : index
    %c0_6 = arith.constant 0 : index
    %4 = vector.load %arg4[%c0_5, %c0_6] : memref<4x50xf32, #tpu.memory_space<vmem>>, vector<4x50xf32>
    %c0_7 = arith.constant 0 : index
    %c0_8 = arith.constant 0 : index
    %5 = vector.load %arg5[%c0_7, %c0_8] : memref<4x4xf32, #tpu.memory_space<vmem>>, vector<4x4xf32>
    %cst = arith.constant dense<0.000000e+00> : vector<10x8xf32>
    %6 = tpu.matmul %2, %1, %cst {dimension_numbers = #tpu.dot_dimension_numbers<[1], [0], [0], [1], [0, 0, 1, 1], [], []>} : vector<10x2xf32>, vector<2x8xf32>, vector<10x8xf32> -> vector<10x8xf32>
    %cst_9 = arith.constant 0.000000e+00 : f32
    %7 = vector.broadcast %cst_9 : f32 to vector<10x8xf32>
    %8 = arith.maximumf %6, %7 : vector<10x8xf32>
    %cst_10 = arith.constant dense<0.000000e+00> : vector<50x8xf32>
    %9 = tpu.matmul %3, %8, %cst_10 {dimension_numbers = #tpu.dot_dimension_numbers<[1], [0], [0], [1], [0, 0, 1, 1], [], []>} : vector<50x10xf32>, vector<10x8xf32>, vector<50x8xf32> -> vector<50x8xf32>
    %cst_11 = arith.constant 0.000000e+00 : f32
    %10 = vector.broadcast %cst_11 : f32 to vector<50x8xf32>
    %11 = arith.maximumf %9, %10 : vector<50x8xf32>
    %cst_12 = arith.constant dense<0.000000e+00> : vector<4x8xf32>
    %12 = tpu.matmul %4, %11, %cst_12 {dimension_numbers = #tpu.dot_dimension_numbers<[1], [0], [0], [1], [0, 0, 1, 1], [], []>} : vector<4x50xf32>, vector<50x8xf32>, vector<4x8xf32> -> vector<4x8xf32>
    %cst_13 = arith.constant 0.000000e+00 : f32
    %13 = vector.broadcast %cst_13 : f32 to vector<4x8xf32>
    %14 = arith.maximumf %12, %13 : vector<4x8xf32>
    %cst_14 = arith.constant dense<0.000000e+00> : vector<4x8xf32>
    %15 = tpu.matmul %5, %14, %cst_14 {dimension_numbers = #tpu.dot_dimension_numbers<[1], [0], [0], [1], [0, 0, 1, 1], [], []>} : vector<4x4xf32>, vector<4x8xf32>, vector<4x8xf32> -> vector<4x8xf32>
    %16 = vector.extract_strided_slice %15 {offsets = [0, 0], sizes = [1, 8], strides = [1, 1]} : vector<4x8xf32> to vector<1x8xf32>
    %17 = vector.extract_strided_slice %15 {offsets = [1, 0], sizes = [1, 8], strides = [1, 1]} : vector<4x8xf32> to vector<1x8xf32>
    %18 = vector.extract_strided_slice %15 {offsets = [2, 0], sizes = [1, 8], strides = [1, 1]} : vector<4x8xf32> to vector<1x8xf32>
    %19 = vector.extract_strided_slice %15 {offsets = [3, 0], sizes = [1, 8], strides = [1, 1]} : vector<4x8xf32> to vector<1x8xf32>
    %20 = arith.maximumf %16, %17 : vector<1x8xf32>
    %21 = arith.maximumf %18, %19 : vector<1x8xf32>
    %22 = arith.maximumf %20, %21 : vector<1x8xf32>
    %23 = vector.broadcast %22 : vector<1x8xf32> to vector<4x8xf32>
    %24 = arith.subf %15, %23 : vector<4x8xf32>
    %25 = math.exp %24 : vector<4x8xf32>
    %26 = vector.extract_strided_slice %25 {offsets = [0, 0], sizes = [1, 8], strides = [1, 1]} : vector<4x8xf32> to vector<1x8xf32>
    %27 = vector.extract_strided_slice %25 {offsets = [1, 0], sizes = [1, 8], strides = [1, 1]} : vector<4x8xf32> to vector<1x8xf32>
    %28 = arith.addf %26, %27 : vector<1x8xf32>
    %29 = vector.extract_strided_slice %25 {offsets = [2, 0], sizes = [1, 8], strides = [1, 1]} : vector<4x8xf32> to vector<1x8xf32>
    %30 = vector.extract_strided_slice %25 {offsets = [3, 0], sizes = [1, 8], strides = [1, 1]} : vector<4x8xf32> to vector<1x8xf32>
    %31 = arith.addf %29, %30 : vector<1x8xf32>
    %32 = arith.addf %28, %31 : vector<1x8xf32>
    %33 = vector.broadcast %32 : vector<1x8xf32> to vector<4x8xf32>
    %34 = arith.divf %25, %33 : vector<4x8xf32>
    %35 = tpu.transpose %34, [1, 0] : vector<4x8xf32> -> vector<8x4xf32>
    %c0_15 = arith.constant 0 : index
    %c0_16 = arith.constant 0 : index
    %36 = vector.load %arg6[%c0_15, %c0_16] : memref<8x4xf32, #tpu.memory_space<vmem>>, vector<8x4xf32>
    tpu.vector_store %arg6[%c0_15, %c0_16], %35 {strides = array<i32>} : memref<8x4xf32, #tpu.memory_space<vmem>>, vector<8x4xf32>,
    return
  }
  func.func @transform_0(%arg0: i32) -> (i32, i32) {
    %c0_i32 = arith.constant 0 : i32
    %c0_i32_0 = arith.constant 0 : i32
    return %arg0, %c0_i32 : i32, i32
  }
  func.func @transform_1(%arg0: i32) -> (i32, i32) {
    %c0_i32 = arith.constant 0 : i32
    %c0_i32_0 = arith.constant 0 : i32
    %c0_i32_1 = arith.constant 0 : i32
    return %c0_i32, %c0_i32_0 : i32, i32
  }
  func.func @transform_2(%arg0: i32) -> (i32, i32) {
    %c0_i32 = arith.constant 0 : i32
    %c0_i32_0 = arith.constant 0 : i32
    %c0_i32_1 = arith.constant 0 : i32
    return %c0_i32, %c0_i32_0 : i32, i32
  }
  func.func @transform_3(%arg0: i32) -> (i32, i32) {
    %c0_i32 = arith.constant 0 : i32
    %c0_i32_0 = arith.constant 0 : i32
    %c0_i32_1 = arith.constant 0 : i32
    return %c0_i32, %c0_i32_0 : i32, i32
  }
  func.func @transform_4(%arg0: i32) -> (i32, i32) {
    %c0_i32 = arith.constant 0 : i32
    %c0_i32_0 = arith.constant 0 : i32
    %c0_i32_1 = arith.constant 0 : i32
    return %c0_i32, %c0_i32_0 : i32, i32
  }
  func.func @transform_5(%arg0: i32) -> (i32, i32) {
    %c0_i32 = arith.constant 0 : i32
    %c0_i32_0 = arith.constant 0 : i32
    return %arg0, %c0_i32 : i32, i32
  }
}

</mosaic_0001>

<llo_original>
// kernel: quadra_gpu_net.1
$region0: #{quadra_gpu_net.1}
  #allocation0 [shape = 'u32[]', space=smem, size = 0x4, offset = 0x4, fixed_abs, tag = 'smem constant byte address 0x4 - core index']
  #allocation1 [shape = 'u32[144,128]{1,0:T(1,128)}', space=vmem, size = 0x12000, scoped, tag = 'internal scratch']
  %s0 = inlined_call_operand.vmem [shape: f32[8,2], index: 0, kind: input, shape index: {}]
  %s1 = inlined_call_operand.vmem [shape: f32[10,2], index: 1, kind: input, shape index: {}]
  %s2 = inlined_call_operand.vmem [shape: f32[50,10], index: 2, kind: input, shape index: {}]
  %s3 = inlined_call_operand.vmem [shape: f32[4,50], index: 3, kind: input, shape index: {}]
  %s4 = inlined_call_operand.vmem [shape: f32[4,4], index: 4, kind: input, shape index: {}]
  %s5 = inlined_call_operand.vmem [shape: f32[8,4], index: 5, kind: output, shape index: {}]
  %s6 = sld [smem:[#allocation0]]
  $region30: #{quadra_gpu_net.1} parent=0
    _
  %s8 = ssub.s32 1, %s6
  %s9 = scalar_select 0, %s8, %s6
  // Predicated region
  $region2: #{quadra_gpu_net.1} parent=0 // pred_check
    _
  $region3: #{quadra_gpu_net.1} parent=0 // pred_check_branch
    %11 = sbr.rel (0) target = $region5
  $region4: #{quadra_gpu_net.1} parent=0 // pred_region
    _
  $region5: #{quadra_gpu_net.1} parent=0 // pred_fallthru
    _
  // Predicated region
  $region6: #{quadra_gpu_net.1} parent=0 // pred_check
    _
  $region7: #{quadra_gpu_net.1} parent=0 // pred_check_branch
    %13 = sbr.rel (0) target = $region9
  $region8: #{quadra_gpu_net.1} parent=0 // pred_region
    _
  $region9: #{quadra_gpu_net.1} parent=0 // pred_fallthru
    _
  // Predicated region
  $region10: #{quadra_gpu_net.1} parent=0 // pred_check
    _
  $region11: #{quadra_gpu_net.1} parent=0 // pred_check_branch
    %15 = sbr.rel (0) target = $region13
  $region12: #{quadra_gpu_net.1} parent=0 // pred_region
    _
  $region13: #{quadra_gpu_net.1} parent=0 // pred_fallthru
    _
  // Predicated region
  $region14: #{quadra_gpu_net.1} parent=0 // pred_check
    _
  $region15: #{quadra_gpu_net.1} parent=0 // pred_check_branch
    %17 = sbr.rel (0) target = $region17
  $region16: #{quadra_gpu_net.1} parent=0 // pred_region
    _
  $region17: #{quadra_gpu_net.1} parent=0 // pred_fallthru
    _
  // Predicated region
  $region18: #{quadra_gpu_net.1} parent=0 // pred_check
    _
  $region19: #{quadra_gpu_net.1} parent=0 // pred_check_branch
    %19 = sbr.rel (0) target = $region21
  $region20: #{quadra_gpu_net.1} parent=0 // pred_region
    _
  $region21: #{quadra_gpu_net.1} parent=0 // pred_fallthru
    _
  %v20 = vld [vmem:[%s0] sm:$0xff]
  %v21 = vld [vmem:[%s1] sm:$0xff]
  %v22 = vld [vmem:[%s1 + $0x8] sm:$0x3]
  %v23 = vld [vmem:[%s2] sm:$0xff]
  %v24 = vld [vmem:[%s2 + $0x8] sm:$0xff]
  %v25 = vld [vmem:[%s2 + $0x10] sm:$0xff]
  %v26 = vld [vmem:[%s2 + $0x18] sm:$0xff]
  %v27 = vld [vmem:[%s2 + $0x20] sm:$0xff]
  %v28 = vld [vmem:[%s2 + $0x28] sm:$0xff]
  %v29 = vld [vmem:[%s2 + $0x30] sm:$0x3]
  %v30 = vld [vmem:[%s3] sm:$0xf]
  %v31 = vld [vmem:[%s4] sm:$0xf]
  %vm32 = vcmask 15360
  %v34 = vsel %vm32, %v21, 0
  %v37 = vsel %vm32, %v22, 0
  %v40 = vsel %vm32, %v20, 0
  %42 = vmatprep.subr.mxu0 0.0
  %43 = vmatpush1.xpose.msra.mxu0 %v40
  %44 = vmatprep.subr.mxu0 0.0
  %45 = vmatpush1.xpose.msra.mxu0 0.0
  %46 = vmatprep.subr.mxu0 0.0
  %47 = vmatpush1.xpose.msra.mxu0 0.0
  %48 = vmatprep.subr.mxu0 0.0
  %49 = vmatpush1.xpose.msra.mxu0 0.0
  %50 = vmatprep.subr.mxu0 0.0
  %51 = vmatpush1.xpose.msra.mxu0 0.0
  %52 = vmatprep.subr.mxu0 0.0
  %53 = vmatpush1.xpose.msra.mxu0 0.0
  %54 = vmatprep.subr.mxu0 0.0
  %55 = vmatpush1.xpose.msra.mxu0 0.0
  %56 = vmatprep.subr.mxu0 0.0
  %57 = vmatpush1.xpose.msra.mxu0 0.0
  %58 = vmatprep.subr.mxu0 0.0
  %59 = vmatpush1.xpose.msra.mxu0 0.0
  %60 = vmatprep.subr.mxu0 0.0
  %61 = vmatpush1.xpose.msra.mxu0 0.0
  %62 = vmatprep.subr.mxu0 0.0
  %63 = vmatpush1.xpose.msra.mxu0 0.0
  %64 = vmatprep.subr.mxu0 0.0
  %65 = vmatpush1.xpose.msra.mxu0 0.0
  %66 = vmatprep.subr.mxu0 0.0
  %67 = vmatpush1.xpose.msra.mxu0 0.0
  %68 = vmatprep.subr.mxu0 0.0
  %69 = vmatpush1.xpose.msra.mxu0 0.0
  %70 = vmatprep.subr.mxu0 0.0
  %71 = vmatpush1.xpose.msra.mxu0 0.0
  %72 = vmatprep.subr.mxu0 0.0
  %73 = vmatpush1.xpose.msra.mxu0 0.0
  %74 = vmatprep.subr.mxu0 0.0
  %75 = vmatpush1.xpose.msra.mxu0 0.0
  %76 = vmatprep.subr.mxu0 0.0
  %77 = vmatpush1.xpose.msra.mxu0 0.0
  %78 = vmatprep.subr.mxu0 0.0
  %79 = vmatpush1.xpose.msra.mxu0 0.0
  %80 = vmatprep.subr.mxu0 0.0
  %81 = vmatpush1.xpose.msra.mxu0 0.0
  %82 = vmatprep.subr.mxu0 0.0
  %83 = vmatpush1.xpose.msra.mxu0 0.0
  %84 = vmatprep.subr.mxu0 0.0
  %85 = vmatpush1.xpose.msra.mxu0 0.0
  %86 = vmatprep.subr.mxu0 0.0
  %87 = vmatpush1.xpose.msra.mxu0 0.0
  %88 = vmatprep.subr.mxu0 0.0
  %89 = vmatpush1.xpose.msra.mxu0 0.0
  %90 = vmatprep.subr.mxu0 0.0
  %91 = vmatpush1.xpose.msra.mxu0 0.0
  %92 = vmatprep.subr.mxu0 0.0
  %93 = vmatpush1.xpose.msra.mxu0 0.0
  %94 = vmatprep.subr.mxu0 0.0
  %95 = vmatpush1.xpose.msra.mxu0 0.0
  %96 = vmatprep.subr.mxu0 0.0
  %97 = vmatpush1.xpose.msra.mxu0 0.0
  %98 = vmatprep.subr.mxu0 0.0
  %99 = vmatpush1.xpose.msra.mxu0 0.0
  %100 = vmatprep.subr.mxu0 0.0
  %101 = vmatpush1.xpose.msra.mxu0 0.0
  %102 = vmatprep.subr.mxu0 0.0
  %103 = vmatpush1.xpose.msra.mxu0 0.0
  %104 = vmatprep.subr.mxu0 0.0
  %105 = vmatpush1.xpose.msra.mxu0 0.0
  %106 = vmatprep.mubr.f32.mxu0 0.0
  %107 = vmatmul.mubr.f32.gmra.mrb[0].mxu0 %v34
  %v108 = vpop.f32.mrb[0].mxu0
  %v109 = vadd.f32 0.0, %v108
  %v110 = vpop.f32.mrb[0].mxu0
  %111 = vmatprep.mubr.f32.mxu0 0.0
  %112 = vmatmul.mubr.f32.gmra.mrb[0].mxu0 %v37
  %v113 = vpop.f32.mrb[0].mxu0
  %v114 = vadd.f32 0.0, %v113
  %v115 = vpop.f32.mrb[0].mxu0
  %116 = vdwg.mxu0
  %v117 = vmax.f32 %v109, 0.0
  %v118 = vmax.f32 %v114, 0.0
  %vm119 = vcmask 80896
  %v121 = vsel %vm119, %v23, 0
  %v124 = vsel %vm119, %v24, 0
  %v127 = vsel %vm119, %v25, 0
  %v130 = vsel %vm119, %v26, 0
  %v133 = vsel %vm119, %v27, 0
  %v136 = vsel %vm119, %v28, 0
  %v139 = vsel %vm119, %v29, 0
  %vm141 = vcmask 1041408
  %v143 = vsel %vm141, %v118, 0
  %145 = vmatprep.subr.mxu0 0.0
  %146 = vmatpush1.msra.mxu0 %v117
  %147 = vmatprep.subr.mxu0 0.0
  %148 = vmatpush1.msra.mxu0 %v143
  %149 = vmatprep.subr.mxu0 0.0
  %150 = vmatpush1.msra.mxu0 0.0
  %151 = vmatprep.subr.mxu0 0.0
  %152 = vmatpush1.msra.mxu0 0.0
  %153 = vmatprep.subr.mxu0 0.0
  %154 = vmatpush1.msra.mxu0 0.0
  %155 = vmatprep.subr.mxu0 0.0
  %156 = vmatpush1.msra.mxu0 0.0
  %157 = vmatprep.subr.mxu0 0.0
  %158 = vmatpush1.msra.mxu0 0.0
  %159 = vmatprep.subr.mxu0 0.0
  %160 = vmatpush1.msra.mxu0 0.0
  %161 = vmatprep.subr.mxu0 0.0
  %162 = vmatpush1.msra.mxu0 0.0
  %163 = vmatprep.subr.mxu0 0.0
  %164 = vmatpush1.msra.mxu0 0.0
  %165 = vmatprep.subr.mxu0 0.0
  %166 = vmatpush1.msra.mxu0 0.0
  %167 = vmatprep.subr.mxu0 0.0
  %168 = vmatpush1.msra.mxu0 0.0
  %169 = vmatprep.subr.mxu0 0.0
  %170 = vmatpush1.msra.mxu0 0.0
  %171 = vmatprep.subr.mxu0 0.0
  %172 = vmatpush1.msra.mxu0 0.0
  %173 = vmatprep.subr.mxu0 0.0
  %174 = vmatpush1.msra.mxu0 0.0
  %175 = vmatprep.subr.mxu0 0.0
  %176 = vmatpush1.msra.mxu0 0.0
  %177 = vmatprep.subr.mxu0 0.0
  %178 = vmatpush1.msra.mxu0 0.0
  %179 = vmatprep.subr.mxu0 0.0
  %180 = vmatpush1.msra.mxu0 0.0
  %181 = vmatprep.subr.mxu0 0.0
  %182 = vmatpush1.msra.mxu0 0.0
  %183 = vmatprep.subr.mxu0 0.0
  %184 = vmatpush1.msra.mxu0 0.0
  %185 = vmatprep.subr.mxu0 0.0
  %186 = vmatpush1.msra.mxu0 0.0
  %187 = vmatprep.subr.mxu0 0.0
  %188 = vmatpush1.msra.mxu0 0.0
  %189 = vmatprep.subr.mxu0 0.0
  %190 = vmatpush1.msra.mxu0 0.0
  %191 = vmatprep.subr.mxu0 0.0
  %192 = vmatpush1.msra.mxu0 0.0
  %193 = vmatprep.subr.mxu0 0.0
  %194 = vmatpush1.msra.mxu0 0.0
  %195 = vmatprep.subr.mxu0 0.0
  %196 = vmatpush1.msra.mxu0 0.0
  %197 = vmatprep.subr.mxu0 0.0
  %198 = vmatpush1.msra.mxu0 0.0
  %199 = vmatprep.subr.mxu0 0.0
  %200 = vmatpush1.msra.mxu0 0.0
  %201 = vmatprep.subr.mxu0 0.0
  %202 = vmatpush1.msra.mxu0 0.0
  %203 = vmatprep.subr.mxu0 0.0
  %204 = vmatpush1.msra.mxu0 0.0
  %205 = vmatprep.subr.mxu0 0.0
  %206 = vmatpush1.msra.mxu0 0.0
  %207 = vmatprep.subr.mxu0 0.0
  %208 = vmatpush1.msra.mxu0 0.0
  %209 = vmatprep.mubr.f32.mxu0 0.0
  %210 = vmatmul.mubr.f32.gmra.mrb[0].mxu0 %v121
  %v211 = vpop.f32.mrb[0].mxu0
  %v212 = vadd.f32 0.0, %v211
  %v213 = vpop.f32.mrb[0].mxu0
  %214 = vmatprep.mubr.f32.mxu0 0.0
  %215 = vmatmul.mubr.f32.gmra.mrb[0].mxu0 %v124
  %v216 = vpop.f32.mrb[0].mxu0
  %v217 = vadd.f32 0.0, %v216
  %v218 = vpop.f32.mrb[0].mxu0
  %219 = vmatprep.mubr.f32.mxu0 0.0
  %220 = vmatmul.mubr.f32.gmra.mrb[0].mxu0 %v127
  %v221 = vpop.f32.mrb[0].mxu0
  %v222 = vadd.f32 0.0, %v221
  %v223 = vpop.f32.mrb[0].mxu0
  %224 = vmatprep.mubr.f32.mxu0 0.0
  %225 = vmatmul.mubr.f32.gmra.mrb[0].mxu0 %v130
  %v226 = vpop.f32.mrb[0].mxu0
  %v227 = vadd.f32 0.0, %v226
  %v228 = vpop.f32.mrb[0].mxu0
  %229 = vmatprep.mubr.f32.mxu0 0.0
  %230 = vmatmul.mubr.f32.gmra.mrb[0].mxu0 %v133
  %v231 = vpop.f32.mrb[0].mxu0
  %v232 = vadd.f32 0.0, %v231
  %v233 = vpop.f32.mrb[0].mxu0
  %234 = vmatprep.mubr.f32.mxu0 0.0
  %235 = vmatmul.mubr.f32.gmra.mrb[0].mxu0 %v136
  %v236 = vpop.f32.mrb[0].mxu0
  %v237 = vadd.f32 0.0, %v236
  %v238 = vpop.f32.mrb[0].mxu0
  %239 = vmatprep.mubr.f32.mxu0 0.0
  %240 = vmatmul.mubr.f32.gmra.mrb[0].mxu0 %v139
  %v241 = vpop.f32.mrb[0].mxu0
  %v242 = vadd.f32 0.0, %v241
  %v243 = vpop.f32.mrb[0].mxu0
  %244 = vdwg.mxu0
  %v245 = vmax.f32 %v212, 0.0
  %v246 = vmax.f32 %v217, 0.0
  %v247 = vmax.f32 %v222, 0.0
  %v248 = vmax.f32 %v227, 0.0
  %v249 = vmax.f32 %v232, 0.0
  %v250 = vmax.f32 %v237, 0.0
  %v251 = vmax.f32 %v242, 0.0
  %vm252 = vcmask 408576
  %v254 = vsel %vm252, %v30, 0
  %v257 = vsel %vm141, %v251, 0
  %259 = vmatprep.subr.mxu0 0.0
  %260 = vmatpush1.msra.mxu0 %v245
  %261 = vmatprep.subr.mxu0 0.0
  %262 = vmatpush1.msra.mxu0 %v246
  %263 = vmatprep.subr.mxu0 0.0
  %264 = vmatpush1.msra.mxu0 %v247
  %265 = vmatprep.subr.mxu0 0.0
  %266 = vmatpush1.msra.mxu0 %v248
  %267 = vmatprep.subr.mxu0 0.0
  %268 = vmatpush1.msra.mxu0 %v249
  %269 = vmatprep.subr.mxu0 0.0
  %270 = vmatpush1.msra.mxu0 %v250
  %271 = vmatprep.subr.mxu0 0.0
  %272 = vmatpush1.msra.mxu0 %v257
  %273 = vmatprep.subr.mxu0 0.0
  %274 = vmatpush1.msra.mxu0 0.0
  %275 = vmatprep.subr.mxu0 0.0
  %276 = vmatpush1.msra.mxu0 0.0
  %277 = vmatprep.subr.mxu0 0.0
  %278 = vmatpush1.msra.mxu0 0.0
  %279 = vmatprep.subr.mxu0 0.0
  %280 = vmatpush1.msra.mxu0 0.0
  %281 = vmatprep.subr.mxu0 0.0
  %282 = vmatpush1.msra.mxu0 0.0
  %283 = vmatprep.subr.mxu0 0.0
  %284 = vmatpush1.msra.mxu0 0.0
  %285 = vmatprep.subr.mxu0 0.0
  %286 = vmatpush1.msra.mxu0 0.0
  %287 = vmatprep.subr.mxu0 0.0
  %288 = vmatpush1.msra.mxu0 0.0
  %289 = vmatprep.subr.mxu0 0.0
  %290 = vmatpush1.msra.mxu0 0.0
  %291 = vmatprep.subr.mxu0 0.0
  %292 = vmatpush1.msra.mxu0 0.0
  %293 = vmatprep.subr.mxu0 0.0
  %294 = vmatpush1.msra.mxu0 0.0
  %295 = vmatprep.subr.mxu0 0.0
  %296 = vmatpush1.msra.mxu0 0.0
  %297 = vmatprep.subr.mxu0 0.0
  %298 = vmatpush1.msra.mxu0 0.0
  %299 = vmatprep.subr.mxu0 0.0
  %300 = vmatpush1.msra.mxu0 0.0
  %301 = vmatprep.subr.mxu0 0.0
  %302 = vmatpush1.msra.mxu0 0.0
  %303 = vmatprep.subr.mxu0 0.0
  %304 = vmatpush1.msra.mxu0 0.0
  %305 = vmatprep.subr.mxu0 0.0
  %306 = vmatpush1.msra.mxu0 0.0
  %307 = vmatprep.subr.mxu0 0.0
  %308 = vmatpush1.msra.mxu0 0.0
  %309 = vmatprep.subr.mxu0 0.0
  %310 = vmatpush1.msra.mxu0 0.0
  %311 = vmatprep.subr.mxu0 0.0
  %312 = vmatpush1.msra.mxu0 0.0
  %313 = vmatprep.subr.mxu0 0.0
  %314 = vmatpush1.msra.mxu0 0.0
  %315 = vmatprep.subr.mxu0 0.0
  %316 = vmatpush1.msra.mxu0 0.0
  %317 = vmatprep.subr.mxu0 0.0
  %318 = vmatpush1.msra.mxu0 0.0
  %319 = vmatprep.subr.mxu0 0.0
  %320 = vmatpush1.msra.mxu0 0.0
  %321 = vmatprep.subr.mxu0 0.0
  %322 = vmatpush1.msra.mxu0 0.0
  %323 = vmatprep.mubr.f32.mxu0 0.0
  %324 = vmatmul.mubr.f32.gmra.mrb[0].mxu0 %v254
  %v325 = vpop.f32.mrb[0].mxu0
  %v326 = vadd.f32 0.0, %v325
  %v327 = vpop.f32.mrb[0].mxu0
  %328 = vdwg.mxu0
  %v329 = vmax.f32 %v326, 0.0
  %vm330 = vcmask 31744
  %v332 = vsel %vm330, %v31, 0
  %vm334 = vcmask 1043456
  %v336 = vsel %vm334, %v329, 0
  %338 = vmatprep.subr.mxu0 0.0
  %339 = vmatpush1.msra.mxu0 %v336
  %340 = vmatprep.subr.mxu0 0.0
  %341 = vmatpush1.msra.mxu0 0.0
  %342 = vmatprep.subr.mxu0 0.0
  %343 = vmatpush1.msra.mxu0 0.0
  %344 = vmatprep.subr.mxu0 0.0
  %345 = vmatpush1.msra.mxu0 0.0
  %346 = vmatprep.subr.mxu0 0.0
  %347 = vmatpush1.msra.mxu0 0.0
  %348 = vmatprep.subr.mxu0 0.0
  %349 = vmatpush1.msra.mxu0 0.0
  %350 = vmatprep.subr.mxu0 0.0
  %351 = vmatpush1.msra.mxu0 0.0
  %352 = vmatprep.subr.mxu0 0.0
  %353 = vmatpush1.msra.mxu0 0.0
  %354 = vmatprep.subr.mxu0 0.0
  %355 = vmatpush1.msra.mxu0 0.0
  %356 = vmatprep.subr.mxu0 0.0
  %357 = vmatpush1.msra.mxu0 0.0
  %358 = vmatprep.subr.mxu0 0.0
  %359 = vmatpush1.msra.mxu0 0.0
  %360 = vmatprep.subr.mxu0 0.0
  %361 = vmatpush1.msra.mxu0 0.0
  %362 = vmatprep.subr.mxu0 0.0
  %363 = vmatpush1.msra.mxu0 0.0
  %364 = vmatprep.subr.mxu0 0.0
  %365 = vmatpush1.msra.mxu0 0.0
  %366 = vmatprep.subr.mxu0 0.0
  %367 = vmatpush1.msra.mxu0 0.0
  %368 = vmatprep.subr.mxu0 0.0
  %369 = vmatpush1.msra.mxu0 0.0
  %370 = vmatprep.subr.mxu0 0.0
  %371 = vmatpush1.msra.mxu0 0.0
  %372 = vmatprep.subr.mxu0 0.0
  %373 = vmatpush1.msra.mxu0 0.0
  %374 = vmatprep.subr.mxu0 0.0
  %375 = vmatpush1.msra.mxu0 0.0
  %376 = vmatprep.subr.mxu0 0.0
  %377 = vmatpush1.msra.mxu0 0.0
  %378 = vmatprep.subr.mxu0 0.0
  %379 = vmatpush1.msra.mxu0 0.0
  %380 = vmatprep.subr.mxu0 0.0
  %381 = vmatpush1.msra.mxu0 0.0
  %382 = vmatprep.subr.mxu0 0.0
  %383 = vmatpush1.msra.mxu0 0.0
  %384 = vmatprep.subr.mxu0 0.0
  %385 = vmatpush1.msra.mxu0 0.0
  %386 = vmatprep.subr.mxu0 0.0
  %387 = vmatpush1.msra.mxu0 0.0
  %388 = vmatprep.subr.mxu0 0.0
  %389 = vmatpush1.msra.mxu0 0.0
  %390 = vmatprep.subr.mxu0 0.0
  %391 = vmatpush1.msra.mxu0 0.0
  %392 = vmatprep.subr.mxu0 0.0
  %393 = vmatpush1.msra.mxu0 0.0
  %394 = vmatprep.subr.mxu0 0.0
  %395 = vmatpush1.msra.mxu0 0.0
  %396 = vmatprep.subr.mxu0 0.0
  %397 = vmatpush1.msra.mxu0 0.0
  %398 = vmatprep.subr.mxu0 0.0
  %399 = vmatpush1.msra.mxu0 0.0
  %400 = vmatprep.subr.mxu0 0.0
  %401 = vmatpush1.msra.mxu0 0.0
  %402 = vmatprep.mubr.f32.mxu0 0.0
  %403 = vmatmul.mubr.f32.gmra.mrb[0].mxu0 %v332
  %v404 = vpop.f32.mrb[0].mxu0
  %v405 = vadd.f32 0.0, %v404
  %v406 = vpop.f32.mrb[0].mxu0
  %407 = vdwg.mxu0
  %v409 = vrot.slane %v405, 1
  %v411 = vmax.f32 %v405, %v409
  %v413 = vrot.slane %v411, 2
  %v415 = vmax.f32 %v411, %v413
  %v416 = vlaneseq
  %v417 = vshrl.u32 %v416, 7
  %v418 = vsub.s32 0, %v417
  %v419 = vrot.slane %v415, %v418
  %v420 = vsub.f32 %v405, %v419
  %v421 = vmul.f32 %v420, 1.442695
  %v422 = vpow.pop %v421
  %v424 = vrot.slane %v422, 1
  %v426 = vadd.f32 %v422, %v424
  %v428 = vrot.slane %v426, 2
  %v430 = vadd.f32 %v426, %v428
  %v431 = vlaneseq
  %v432 = vshrl.u32 %v431, 7
  %v433 = vsub.s32 0, %v432
  %v434 = vrot.slane %v430, %v433
  %v435 = vrcp.pop %v434
  %v436 = vmul.f32 %v422, %v435
  %437 = vxpose.xlu0.b32.start [1/16] %v436, 128
  %438 = vxpose.xlu0.b32.cont [2/16] 0.0, 128
  %439 = vxpose.xlu0.b32.cont [3/16] 0.0, 128
  %440 = vxpose.xlu0.b32.cont [4/16] 0.0, 128
  %441 = vxpose.xlu0.b32.cont [5/16] 0.0, 128
  %442 = vxpose.xlu0.b32.cont [6/16] 0.0, 128
  %443 = vxpose.xlu0.b32.cont [7/16] 0.0, 128
  %444 = vxpose.xlu0.b32.cont [8/16] 0.0, 128
  %445 = vxpose.xlu0.b32.cont [9/16] 0.0, 128
  %446 = vxpose.xlu0.b32.cont [10/16] 0.0, 128
  %447 = vxpose.xlu0.b32.cont [11/16] 0.0, 128
  %448 = vxpose.xlu0.b32.cont [12/16] 0.0, 128
  %449 = vxpose.xlu0.b32.cont [13/16] 0.0, 128
  %450 = vxpose.xlu0.b32.cont [14/16] 0.0, 128
  %451 = vxpose.xlu0.b32.cont [15/16] 0.0, 128
  %452 = vxpose.xlu0.b32.end [16/16] 0.0, 128
  %v453 = vpop.trf.xlu0
  %v454 = vpop.trf.xlu0
  %v455 = vpop.trf.xlu0
  %v456 = vpop.trf.xlu0
  %v457 = vpop.trf.xlu0
  %v458 = vpop.trf.xlu0
  %v459 = vpop.trf.xlu0
  %v460 = vpop.trf.xlu0
  %v461 = vpop.trf.xlu0
  %v462 = vpop.trf.xlu0
  %v463 = vpop.trf.xlu0
  %v464 = vpop.trf.xlu0
  %v465 = vpop.trf.xlu0
  %v466 = vpop.trf.xlu0
  %v467 = vpop.trf.xlu0
  %v468 = vpop.trf.xlu0
  %469 = vst.msk [vmem:[%s5] sm:$0xff] %vm330, %v453
  // Predicated region
  $region22: #{quadra_gpu_net.1} parent=0 // pred_check
    _
  $region23: #{quadra_gpu_net.1} parent=0 // pred_check_branch
    %471 = sbr.rel (0) target = $region25
  $region24: #{quadra_gpu_net.1} parent=0 // pred_region
    _
  $region25: #{quadra_gpu_net.1} parent=0 // pred_fallthru
    _
  // Predicated region
  $region26: #{quadra_gpu_net.1} parent=0 // pred_check
    _
  $region27: #{quadra_gpu_net.1} parent=0 // pred_check_branch
    %473 = sbr.rel (0) target = $region29
  $region28: #{quadra_gpu_net.1} parent=0 // pred_region
    _
  $region29: #{quadra_gpu_net.1} parent=0 // pred_fallthru
    _

</llo_original>
